<compile_context>
chip_gen: v7x
topology: tpu7x:2x2x1
jax: 0.10.0
libtpu: 0.0.40
codegen_flags: <defaults>
</compile_context>

<pallas_src>
import functools
import math

import jax
import jax.numpy as jnp
from jax.experimental import pallas as pl
from jax.experimental.pallas import tpu as pltpu

_LOG_EPS = math.log(1e-8)  # PyTorch: log(0 + 1e-8) when a softmax prob underflows to 0


def _round_up(x, m):
    return ((x + m - 1) // m) * m


def actor_discrete_kernel(x_ref, w1_ref, b1_ref, w2_ref, b2_ref, w3_ref, b3_ref,
                          out_ref):
    """One grid step processes 2*tb batch rows (two batch 'halves' folded over lanes).

    x_ref   : (2, tb, S) f32  state tile (bf16 cast happens here, in-kernel)
    out_ref : (tb, pack_w) f32 lane-dense slab.  Per half (width half_w = pack_w/2):
                [0:A]        action_probs
                [A:2A]       log_action_probs
                [2A:2A+H]    feature (extractor output)
                [2A+H:]      zero pad
              lanes [0, half_w) hold half-0 rows, lanes [half_w, pack_w) half-1 rows.
    """
    H = w2_ref.shape[1]
    A = w3_ref.shape[1]
    _, tb, S = x_ref.shape
    half_w = out_ref.shape[1] // 2

    # Fold the two batch halves into one (2*tb, S) tile (layout-preserving reshape),
    # cast to bf16 for the MXU.
    x = x_ref[...].reshape(2 * tb, S).astype(jnp.bfloat16)

    # extractor: Linear -> ReLU -> Linear -> ReLU  (bf16 operands, f32 accumulate)
    h1 = jnp.dot(x, w1_ref[...], preferred_element_type=jnp.float32) + b1_ref[...]
    h1 = jnp.maximum(h1, 0.0)
    h2 = jnp.dot(h1.astype(jnp.bfloat16), w2_ref[...],
                 preferred_element_type=jnp.float32) + b2_ref[...]
    h2 = jnp.maximum(h2, 0.0)                                  # feature, f32

    # classifier: Linear -> Softmax(dim=-1), via numerically-stable log-softmax
    logits = jnp.dot(h2.astype(jnp.bfloat16), w3_ref[...],
                     preferred_element_type=jnp.float32) + b3_ref[...]
    m = jnp.max(logits, axis=-1, keepdims=True)
    s = logits - m
    lse = jnp.log(jnp.sum(jnp.exp(s), axis=-1, keepdims=True))
    logp_sm = s - lse                                          # log_softmax(logits)
    probs = jnp.exp(logp_sm)                                   # softmax(logits)

    # PyTorch: z = (probs == 0).float() * 1e-8 ; log(probs + z)
    logp = jnp.where(probs == 0.0, jnp.float32(_LOG_EPS), logp_sm)

    # Assemble one lane-dense row per pair of batch rows and do a single
    # unmasked full-width store (no partial vst.msk stores, no separate pad fill).
    pad = half_w - (2 * A + H)
    pieces = [probs, logp, h2]
    if pad > 0:
        pieces.append(jnp.zeros((2 * tb, pad), jnp.float32))
    payload = jnp.concatenate(pieces, axis=-1)                 # [2*tb, half_w]
    out_ref[...] = jnp.concatenate([payload[:tb], payload[tb:]], axis=-1)


def actor_discrete_forward(state, params, *, tile_rows=2048):
    """state: [B, num_states] f32. params: dict of [in, out] weights, (1, out) biases.

    Returns (action_probs [B, A], log_action_probs [B, A], feature [B, H]), all f32.
    """
    B, S = state.shape
    H = params["w1"].shape[1]
    A = params["w3"].shape[1]

    half_w = _round_up(2 * A + H, 64)     # per-batch-row payload width (half slab row)
    pack_w = 2 * half_w                   # lane-dense output width (multiple of 128)

    # Fold the batch into two lane-groups of R rows each.  Size the tile to
    # minimize padding (grid first, then tile = round_up(cdiv(rows, grid), 8))
    # and keep the grid >= 2 steps when there is enough work so the batch can
    # shard across both TensorCores on v7x.
    tile_half = max(8, tile_rows // 2)    # rows-per-half per grid step
    r_min = pl.cdiv(B, 2)
    grid_n = pl.cdiv(r_min, tile_half)
    if grid_n == 1 and r_min > 8:
        grid_n = 2
    tb = _round_up(pl.cdiv(r_min, grid_n), 8)
    R = grid_n * tb
    total = 2 * R
    if total != B:
        state = jnp.pad(state, ((0, total - B), (0, 0)))
    x3 = state.reshape(2, R, S)           # metadata-only reshape; stays f32 (no wrapper cast)

    # bf16 MXU operands for the weights; biases + elementwise tail stay f32.
    w1 = params["w1"].astype(jnp.bfloat16)
    w2 = params["w2"].astype(jnp.bfloat16)
    w3 = params["w3"].astype(jnp.bfloat16)
    b1 = params["b1"].astype(jnp.float32)
    b2 = params["b2"].astype(jnp.float32)
    b3 = params["b3"].astype(jnp.float32)

    cost = pl.CostEstimate(
        flops=2 * total * (S * H + H * H + H * A),
        transcendentals=total * (A + 1),
        bytes_accessed=(x3.size * 4
                        + (w1.size + w2.size + w3.size) * 2
                        + (b1.size + b2.size + b3.size) * 4
                        + R * pack_w * 4),
    )

    packed = pl.pallas_call(
        actor_discrete_kernel,
        out_shape=jax.ShapeDtypeStruct((R, pack_w), jnp.float32),
        grid_spec=pltpu.PrefetchScalarGridSpec(
            num_scalar_prefetch=0,
            grid=(grid_n,),
            in_specs=[
                pl.BlockSpec((2, tb, S), lambda i: (0, i, 0)),  # state tile (pipelined)
                pl.BlockSpec((S, H), lambda i: (0, 0)),         # w1 (VMEM-resident)
                pl.BlockSpec((1, H), lambda i: (0, 0)),         # b1
                pl.BlockSpec((H, H), lambda i: (0, 0)),         # w2
                pl.BlockSpec((1, H), lambda i: (0, 0)),         # b2
                pl.BlockSpec((H, A), lambda i: (0, 0)),         # w3
                pl.BlockSpec((1, A), lambda i: (0, 0)),         # b3
            ],
            out_specs=pl.BlockSpec((tb, pack_w), lambda i: (i, 0)),
        ),
        compiler_params=pltpu.CompilerParams(
            dimension_semantics=("parallel",),   # shard batch grid across TCs (v7x)
        ),
        cost_estimate=cost,
    )(x3, w1, b1, w2, b2, w3, b3)

    # Unpack: lanes [0, half_w) -> padded rows [0, R); lanes [half_w, pack_w) -> [R, 2R).
    rows = jnp.concatenate([packed[:, :half_w], packed[:, half_w:]], axis=0)[:B]
    probs = rows[:, 0:A]
    logp = rows[:, A:2 * A]
    feat = rows[:, 2 * A:2 * A + H]
    return probs, logp, feat


def init_params(key, num_states, num_actions, num_hidden):
    """Deterministic synthetic params. Stored as [in, out] (transposed vs torch)."""
    ks = jax.random.split(key, 6)

    def lin(kw, kb, fan_in, fan_out):
        bound = 1.0 / jnp.sqrt(fan_in)
        w = jax.random.uniform(kw, (fan_in, fan_out), jnp.float32, -bound, bound)
        b = jax.random.uniform(kb, (1, fan_out), jnp.float32, -bound, bound)
        return w, b

    w1, b1 = lin(ks[0], ks[1], num_states, num_hidden)
    w2, b2 = lin(ks[2], ks[3], num_hidden, num_hidden)
    w3, b3 = lin(ks[4], ks[5], num_hidden, num_actions)
    return {"w1": w1, "b1": b1, "w2": w2, "b2": b2, "w3": w3, "b3": b3}


def reference_forward(state, p):
    """Pure-JAX reference mirroring the kernel's bf16-operand / f32-accumulate math,
    with the PyTorch-faithful softmax / log(probs + z) formulation."""
    f32 = lambda a: a.astype(jnp.bfloat16).astype(jnp.float32)
    x = f32(state)
    w1, w2, w3 = f32(p["w1"]), f32(p["w2"]), f32(p["w3"])
    h1 = jnp.maximum(x @ w1 + p["b1"], 0.0)
    h2 = jnp.maximum(f32(h1) @ w2 + p["b2"], 0.0)
    logits = f32(h2) @ w3 + p["b3"]
    probs = jax.nn.softmax(logits, axis=-1)
    z = jnp.where(probs == 0.0, 1e-8, 0.0)
    return probs, jnp.log(probs + z), h2


if __name__ == "__main__":
    num_states, num_actions, num_hidden = 16, 4, 32
    batch = 8

    key = jax.random.PRNGKey(0)
    k_params, k_state = jax.random.split(key)
    params = init_params(k_params, num_states, num_actions, num_hidden)
    state = jax.random.normal(k_state, (batch, num_states), jnp.float32)

    fwd = jax.jit(functools.partial(actor_discrete_forward, tile_rows=256))
    probs, logp, feat = fwd(state, params)
    jax.block_until_ready((probs, logp, feat))

    # sanity check vs pure-JAX reference
    r_probs, r_logp, r_feat = reference_forward(state, params)
    assert probs.shape == (batch, num_actions)
    assert logp.shape == (batch, num_actions)
    assert feat.shape == (batch, num_hidden)
    assert jnp.allclose(probs, r_probs, atol=1e-4, rtol=1e-4), "probs mismatch"
    assert jnp.allclose(logp, r_logp, atol=1e-4, rtol=1e-4), "log probs mismatch"
    assert jnp.allclose(feat, r_feat, atol=1e-4, rtol=1e-4), "feature mismatch"
    assert jnp.allclose(jnp.sum(probs, axis=-1), 1.0, atol=1e-5), "softmax not normalized"

    print("KERNEL_OK")
</pallas_src>

<mosaic_0001>
module attributes {stable_mosaic.version = 11 : i64} {
  func.func @actor_discrete_kernel(%arg0: i32, %arg1: memref<2x8x16xf32, #tpu.memory_space<vmem>>, %arg2: memref<16x32xbf16, #tpu.memory_space<vmem>>, %arg3: memref<1x32xf32, #tpu.memory_space<vmem>>, %arg4: memref<32x32xbf16, #tpu.memory_space<vmem>>, %arg5: memref<1x32xf32, #tpu.memory_space<vmem>>, %arg6: memref<32x4xbf16, #tpu.memory_space<vmem>>, %arg7: memref<1x4xf32, #tpu.memory_space<vmem>>, %arg8: memref<8x128xf32, #tpu.memory_space<vmem>>) attributes {dimension_semantics = [#tpu.dimension_semantics<parallel>], iteration_bounds = array<i64: 1>, scalar_prefetch = 0 : i64, scratch_operands = 0 : i64, tpu.core_type = #tpu.core_type<tc>, window_params = [{transform_indices = @transform_0, window_bounds = array<i64: 2, 8, 16>}, {pipeline_mode = #tpu.pipeline_mode<synchronous>, transform_indices = @transform_1, window_bounds = array<i64: 16, 32>}, {pipeline_mode = #tpu.pipeline_mode<synchronous>, transform_indices = @transform_2, window_bounds = array<i64: 1, 32>}, {pipeline_mode = #tpu.pipeline_mode<synchronous>, transform_indices = @transform_3, window_bounds = array<i64: 32, 32>}, {pipeline_mode = #tpu.pipeline_mode<synchronous>, transform_indices = @transform_4, window_bounds = array<i64: 1, 32>}, {pipeline_mode = #tpu.pipeline_mode<synchronous>, transform_indices = @transform_5, window_bounds = array<i64: 32, 4>}, {pipeline_mode = #tpu.pipeline_mode<synchronous>, transform_indices = @transform_6, window_bounds = array<i64: 1, 4>}, {transform_indices = @transform_7, window_bounds = array<i64: 8, 128>}]} {
    %c0 = arith.constant 0 : index
    %c0_0 = arith.constant 0 : index
    %c0_1 = arith.constant 0 : index
    %0 = vector.load %arg1[%c0, %c0_0, %c0_1] : memref<2x8x16xf32, #tpu.memory_space<vmem>>, vector<2x8x16xf32>
    %1 = vector.shape_cast %0 : vector<2x8x16xf32> to vector<16x16xf32>
    %2 = arith.truncf %1 : vector<16x16xf32> to vector<16x16xbf16>
    %c0_2 = arith.constant 0 : index
    %c0_3 = arith.constant 0 : index
    %3 = vector.load %arg2[%c0_2, %c0_3] : memref<16x32xbf16, #tpu.memory_space<vmem>>, vector<16x32xbf16>
    %cst = arith.constant dense<0.000000e+00> : vector<16x32xf32>
    %4 = tpu.matmul %2, %3, %cst {dimension_numbers = #tpu.dot_dimension_numbers<[1], [0], [0], [1], [0, 0, 1, 1], [], []>} : vector<16x16xbf16>, vector<16x32xbf16>, vector<16x32xf32> -> vector<16x32xf32>
    %c0_4 = arith.constant 0 : index
    %c0_5 = arith.constant 0 : index
    %5 = vector.load %arg3[%c0_4, %c0_5] : memref<1x32xf32, #tpu.memory_space<vmem>>, vector<1x32xf32>
    %6 = vector.broadcast %5 : vector<1x32xf32> to vector<16x32xf32>
    %7 = arith.addf %4, %6 : vector<16x32xf32>
    %cst_6 = arith.constant 0.000000e+00 : f32
    %8 = vector.broadcast %cst_6 : f32 to vector<16x32xf32>
    %9 = arith.maximumf %7, %8 : vector<16x32xf32>
    %10 = arith.truncf %9 : vector<16x32xf32> to vector<16x32xbf16>
    %c0_7 = arith.constant 0 : index
    %c0_8 = arith.constant 0 : index
    %11 = vector.load %arg4[%c0_7, %c0_8] : memref<32x32xbf16, #tpu.memory_space<vmem>>, vector<32x32xbf16>
    %cst_9 = arith.constant dense<0.000000e+00> : vector<16x32xf32>
    %12 = tpu.matmul %10, %11, %cst_9 {dimension_numbers = #tpu.dot_dimension_numbers<[1], [0], [0], [1], [0, 0, 1, 1], [], []>} : vector<16x32xbf16>, vector<32x32xbf16>, vector<16x32xf32> -> vector<16x32xf32>
    %c0_10 = arith.constant 0 : index
    %c0_11 = arith.constant 0 : index
    %13 = vector.load %arg5[%c0_10, %c0_11] : memref<1x32xf32, #tpu.memory_space<vmem>>, vector<1x32xf32>
    %14 = vector.broadcast %13 : vector<1x32xf32> to vector<16x32xf32>
    %15 = arith.addf %12, %14 : vector<16x32xf32>
    %cst_12 = arith.constant 0.000000e+00 : f32
    %16 = vector.broadcast %cst_12 : f32 to vector<16x32xf32>
    %17 = arith.maximumf %15, %16 : vector<16x32xf32>
    %18 = arith.truncf %17 : vector<16x32xf32> to vector<16x32xbf16>
    %c0_13 = arith.constant 0 : index
    %c0_14 = arith.constant 0 : index
    %19 = vector.load %arg6[%c0_13, %c0_14] : memref<32x4xbf16, #tpu.memory_space<vmem>>, vector<32x4xbf16>
    %cst_15 = arith.constant dense<0.000000e+00> : vector<16x4xf32>
    %20 = tpu.matmul %18, %19, %cst_15 {dimension_numbers = #tpu.dot_dimension_numbers<[1], [0], [0], [1], [0, 0, 1, 1], [], []>} : vector<16x32xbf16>, vector<32x4xbf16>, vector<16x4xf32> -> vector<16x4xf32>
    %c0_16 = arith.constant 0 : index
    %c0_17 = arith.constant 0 : index
    %21 = vector.load %arg7[%c0_16, %c0_17] : memref<1x4xf32, #tpu.memory_space<vmem>>, vector<1x4xf32>
    %22 = vector.broadcast %21 : vector<1x4xf32> to vector<16x4xf32>
    %23 = arith.addf %20, %22 : vector<16x4xf32>
    %cst_18 = arith.constant dense<0xFF800000> : vector<16xf32>
    %24 = vector.multi_reduction <maximumf>, %23, %cst_18 [1] : vector<16x4xf32> to vector<16xf32>
    %25 = vector.shape_cast %24 : vector<16xf32> to vector<16x1xf32>
    %26 = vector.broadcast %25 : vector<16x1xf32> to vector<16x4xf32>
    %27 = arith.subf %23, %26 : vector<16x4xf32>
    %28 = math.exp %27 : vector<16x4xf32>
    %cst_19 = arith.constant dense<0.000000e+00> : vector<16xf32>
    %29 = vector.multi_reduction <add>, %28, %cst_19 [1] : vector<16x4xf32> to vector<16xf32>
    %30 = vector.shape_cast %29 : vector<16xf32> to vector<16x1xf32>
    %31 = math.log %30 : vector<16x1xf32>
    %32 = vector.broadcast %31 : vector<16x1xf32> to vector<16x4xf32>
    %33 = arith.subf %27, %32 : vector<16x4xf32>
    %34 = math.exp %33 : vector<16x4xf32>
    %cst_20 = arith.constant 0.000000e+00 : f32
    %35 = vector.broadcast %cst_20 : f32 to vector<16x4xf32>
    %36 = arith.cmpf oeq, %34, %35 : vector<16x4xf32>
    %cst_21 = arith.constant -18.420681 : f32
    %37 = vector.broadcast %cst_21 : f32 to vector<16x4xf32>
    %38 = arith.select %36, %37, %33 : vector<16x4xi1>, vector<16x4xf32>
    %cst_22 = arith.constant 0.000000e+00 : f32
    %39 = vector.broadcast %cst_22 : f32 to vector<16x24xf32>
    %40 = tpu.concatenate %34, %38, %17, %39 in 1 : vector<16x4xf32>, vector<16x4xf32>, vector<16x32xf32>, vector<16x24xf32> -> vector<16x64xf32>
    %41 = vector.extract_strided_slice %40 {offsets = [0, 0], sizes = [8, 64], strides = [1, 1]} : vector<16x64xf32> to vector<8x64xf32>
    %42 = vector.extract_strided_slice %40 {offsets = [8, 0], sizes = [8, 64], strides = [1, 1]} : vector<16x64xf32> to vector<8x64xf32>
    %43 = tpu.concatenate %41, %42 in 1 : vector<8x64xf32>, vector<8x64xf32> -> vector<8x128xf32>
    %c0_23 = arith.constant 0 : index
    %c0_24 = arith.constant 0 : index
    %44 = vector.load %arg8[%c0_23, %c0_24] : memref<8x128xf32, #tpu.memory_space<vmem>>, vector<8x128xf32>
    tpu.vector_store %arg8[%c0_23, %c0_24], %43 {strides = array<i32>} : memref<8x128xf32, #tpu.memory_space<vmem>>, vector<8x128xf32>,
    return
  }
  func.func @transform_0(%arg0: i32) -> (i32, i32, i32) {
    %c0_i32 = arith.constant 0 : i32
    %c0_i32_0 = arith.constant 0 : i32
    %c0_i32_1 = arith.constant 0 : i32
    return %c0_i32, %arg0, %c0_i32_0 : i32, i32, i32
  }
  func.func @transform_1(%arg0: i32) -> (i32, i32) {
    %c0_i32 = arith.constant 0 : i32
    %c0_i32_0 = arith.constant 0 : i32
    %c0_i32_1 = arith.constant 0 : i32
    return %c0_i32, %c0_i32_0 : i32, i32
  }
  func.func @transform_2(%arg0: i32) -> (i32, i32) {
    %c0_i32 = arith.constant 0 : i32
    %c0_i32_0 = arith.constant 0 : i32
    %c0_i32_1 = arith.constant 0 : i32
    return %c0_i32, %c0_i32_0 : i32, i32
  }
  func.func @transform_3(%arg0: i32) -> (i32, i32) {
    %c0_i32 = arith.constant 0 : i32
    %c0_i32_0 = arith.constant 0 : i32
    %c0_i32_1 = arith.constant 0 : i32
    return %c0_i32, %c0_i32_0 : i32, i32
  }
  func.func @transform_4(%arg0: i32) -> (i32, i32) {
    %c0_i32 = arith.constant 0 : i32
    %c0_i32_0 = arith.constant 0 : i32
    %c0_i32_1 = arith.constant 0 : i32
    return %c0_i32, %c0_i32_0 : i32, i32
  }
  func.func @transform_5(%arg0: i32) -> (i32, i32) {
    %c0_i32 = arith.constant 0 : i32
    %c0_i32_0 = arith.constant 0 : i32
    %c0_i32_1 = arith.constant 0 : i32
    return %c0_i32, %c0_i32_0 : i32, i32
  }
  func.func @transform_6(%arg0: i32) -> (i32, i32) {
    %c0_i32 = arith.constant 0 : i32
    %c0_i32_0 = arith.constant 0 : i32
    %c0_i32_1 = arith.constant 0 : i32
    return %c0_i32, %c0_i32_0 : i32, i32
  }
  func.func @transform_7(%arg0: i32) -> (i32, i32) {
    %c0_i32 = arith.constant 0 : i32
    %c0_i32_0 = arith.constant 0 : i32
    return %arg0, %c0_i32 : i32, i32
  }
}

</mosaic_0001>

<llo_original>
// kernel: actor_discrete_forward.1
$region0: #{actor_discrete_forward.1}
  #allocation0 [shape = 'u32[]', space=smem, size = 0x4, offset = 0x4, fixed_abs, tag = 'smem constant byte address 0x4 - core index']
  #allocation1 [shape = 'u32[144,128]{1,0:T(1,128)}', space=vmem, size = 0x12000, scoped, tag = 'internal scratch']
  %s0 = inlined_call_operand.vmem [shape: f32[2,8,16], index: 0, kind: input, shape index: {}]
  %s1 = inlined_call_operand.vmem [shape: bf16[16,32], index: 1, kind: input, shape index: {}]
  %s2 = inlined_call_operand.vmem [shape: f32[1,32], index: 2, kind: input, shape index: {}]
  %s3 = inlined_call_operand.vmem [shape: bf16[32,32], index: 3, kind: input, shape index: {}]
  %s4 = inlined_call_operand.vmem [shape: f32[1,32], index: 4, kind: input, shape index: {}]
  %s5 = inlined_call_operand.vmem [shape: bf16[32,4], index: 5, kind: input, shape index: {}]
  %s6 = inlined_call_operand.vmem [shape: f32[1,4], index: 6, kind: input, shape index: {}]
  %s7 = inlined_call_operand.vmem [shape: f32[8,128], index: 7, kind: output, shape index: {}]
  %s8 = sld [smem:[#allocation0]]
  $region38: #{actor_discrete_forward.1} parent=0
    _
  %s10 = ssub.s32 1, %s8
  %s11 = scalar_select 0, %s10, %s8
  // Predicated region
  $region2: #{actor_discrete_forward.1} parent=0 // pred_check
    _
  $region3: #{actor_discrete_forward.1} parent=0 // pred_check_branch
    %13 = sbr.rel (0) target = $region5
  $region4: #{actor_discrete_forward.1} parent=0 // pred_region
    _
  $region5: #{actor_discrete_forward.1} parent=0 // pred_fallthru
    _
  // Predicated region
  $region6: #{actor_discrete_forward.1} parent=0 // pred_check
    _
  $region7: #{actor_discrete_forward.1} parent=0 // pred_check_branch
    %15 = sbr.rel (0) target = $region9
  $region8: #{actor_discrete_forward.1} parent=0 // pred_region
    _
  $region9: #{actor_discrete_forward.1} parent=0 // pred_fallthru
    _
  // Predicated region
  $region10: #{actor_discrete_forward.1} parent=0 // pred_check
    _
  $region11: #{actor_discrete_forward.1} parent=0 // pred_check_branch
    %17 = sbr.rel (0) target = $region13
  $region12: #{actor_discrete_forward.1} parent=0 // pred_region
    _
  $region13: #{actor_discrete_forward.1} parent=0 // pred_fallthru
    _
  // Predicated region
  $region14: #{actor_discrete_forward.1} parent=0 // pred_check
    _
  $region15: #{actor_discrete_forward.1} parent=0 // pred_check_branch
    %19 = sbr.rel (0) target = $region17
  $region16: #{actor_discrete_forward.1} parent=0 // pred_region
    _
  $region17: #{actor_discrete_forward.1} parent=0 // pred_fallthru
    _
  // Predicated region
  $region18: #{actor_discrete_forward.1} parent=0 // pred_check
    _
  $region19: #{actor_discrete_forward.1} parent=0 // pred_check_branch
    %21 = sbr.rel (0) target = $region21
  $region20: #{actor_discrete_forward.1} parent=0 // pred_region
    _
  $region21: #{actor_discrete_forward.1} parent=0 // pred_fallthru
    _
  // Predicated region
  $region22: #{actor_discrete_forward.1} parent=0 // pred_check
    _
  $region23: #{actor_discrete_forward.1} parent=0 // pred_check_branch
    %23 = sbr.rel (0) target = $region25
  $region24: #{actor_discrete_forward.1} parent=0 // pred_region
    _
  $region25: #{actor_discrete_forward.1} parent=0 // pred_fallthru
    _
  // Predicated region
  $region26: #{actor_discrete_forward.1} parent=0 // pred_check
    _
  $region27: #{actor_discrete_forward.1} parent=0 // pred_check_branch
    %25 = sbr.rel (0) target = $region29
  $region28: #{actor_discrete_forward.1} parent=0 // pred_region
    _
  $region29: #{actor_discrete_forward.1} parent=0 // pred_fallthru
    _
  %v27 = vld [vmem:[%s0] sm:$0xff]
  %v28 = vld [vmem:[%s0 + $0x8] sm:$0xff]
  %v29 = vpack.c.bf16 %v28, %v27
  %v30 = vld [vmem:[%s1] sm:$0xf]
  %v31 = vld [vmem:[%s1 + $0x4] sm:$0xf]
  %v32 = vld [vmem:[%s2] sm:$0x1]
  %v34 = vlaneseq
  %v35 = vshrl.u32 %v34, 7
  %v36 = vsub.s32 0, %v35
  %v37 = vrot.slane %v32, %v36
  %v41 = vunpack.c.l.b16 %v30
  %v42 = vunpack.c.l.b16 %v31
  %v43 = vpack.c.b16 %v42, %v41
  %vm45 = vcmask 130048
  %v47 = vsel %vm45, %v29, 0
  %49 = vmatprep.subr.bf16.mxu0 0
  %50 = vmatpush1.bf16.msra.mxu0 %v43
  %51 = vmatprep.subr.bf16.mxu0 0
  %52 = vmatpush1.bf16.msra.mxu0 0
  %53 = vmatprep.subr.bf16.mxu0 0
  %54 = vmatpush1.bf16.msra.mxu0 0
  %55 = vmatprep.subr.bf16.mxu0 0
  %56 = vmatpush1.bf16.msra.mxu0 0
  %57 = vmatprep.subr.bf16.mxu0 0
  %58 = vmatpush1.bf16.msra.mxu0 0
  %59 = vmatprep.subr.bf16.mxu0 0
  %60 = vmatpush1.bf16.msra.mxu0 0
  %61 = vmatprep.subr.bf16.mxu0 0
  %62 = vmatpush1.bf16.msra.mxu0 0
  %63 = vmatprep.subr.bf16.mxu0 0
  %64 = vmatpush1.bf16.msra.mxu0 0
  %65 = vmatprep.subr.bf16.mxu0 0
  %66 = vmatpush1.bf16.msra.mxu0 0
  %67 = vmatprep.subr.bf16.mxu0 0
  %68 = vmatpush1.bf16.msra.mxu0 0
  %69 = vmatprep.subr.bf16.mxu0 0
  %70 = vmatpush1.bf16.msra.mxu0 0
  %71 = vmatprep.subr.bf16.mxu0 0
  %72 = vmatpush1.bf16.msra.mxu0 0
  %73 = vmatprep.subr.bf16.mxu0 0
  %74 = vmatpush1.bf16.msra.mxu0 0
  %75 = vmatprep.subr.bf16.mxu0 0
  %76 = vmatpush1.bf16.msra.mxu0 0
  %77 = vmatprep.subr.bf16.mxu0 0
  %78 = vmatpush1.bf16.msra.mxu0 0
  %79 = vmatprep.subr.bf16.mxu0 0
  %80 = vmatpush1.bf16.msra.mxu0 0
  %81 = vmatprep.mubr.bf16.mxu0 0
  %82 = vmatmul.mubr.bf16.gmra.mrb[0].mxu0 %v47
  %v83 = vpop.f32.mrb[0].mxu0
  %v84 = vadd.f32 %v37, %v83
  %v85 = vpop.f32.mrb[0].mxu0
  %v86 = vpop.f32.mrb[0].mxu0
  %v87 = vadd.f32 %v37, %v86
  %v88 = vpop.f32.mrb[0].mxu0
  %89 = vdwg.mxu0
  %v90 = vmax.f32 %v84, 0.0
  %v91 = vmax.f32 %v87, 0.0
  %v92 = vpack.c.bf16 %v91, %v90
  %v93 = vld [vmem:[%s3] sm:$0xf]
  %v94 = vld [vmem:[%s3 + $0x4] sm:$0xf]
  %v95 = vld [vmem:[%s3 + $0x8] sm:$0xf]
  %v96 = vld [vmem:[%s3 + $0xc] sm:$0xf]
  %v97 = vld [vmem:[%s4] sm:$0x1]
  %v99 = vlaneseq
  %v100 = vshrl.u32 %v99, 7
  %v101 = vsub.s32 0, %v100
  %v102 = vrot.slane %v97, %v101
  %v108 = vunpack.c.l.b16 %v93
  %v109 = vunpack.c.l.b16 %v94
  %v110 = vunpack.c.l.b16 %v95
  %v111 = vunpack.c.l.b16 %v96
  %v112 = vpack.c.b16 %v109, %v108
  %v113 = vpack.c.b16 %v111, %v110
  %vm116 = vcmask 261120
  %v118 = vsel %vm116, %v92, 0
  %120 = vmatprep.subr.bf16.mxu0 0
  %121 = vmatpush1.bf16.msra.mxu0 %v112
  %122 = vmatprep.subr.bf16.mxu0 0
  %123 = vmatpush1.bf16.msra.mxu0 %v113
  %124 = vmatprep.subr.bf16.mxu0 0
  %125 = vmatpush1.bf16.msra.mxu0 0
  %126 = vmatprep.subr.bf16.mxu0 0
  %127 = vmatpush1.bf16.msra.mxu0 0
  %128 = vmatprep.subr.bf16.mxu0 0
  %129 = vmatpush1.bf16.msra.mxu0 0
  %130 = vmatprep.subr.bf16.mxu0 0
  %131 = vmatpush1.bf16.msra.mxu0 0
  %132 = vmatprep.subr.bf16.mxu0 0
  %133 = vmatpush1.bf16.msra.mxu0 0
  %134 = vmatprep.subr.bf16.mxu0 0
  %135 = vmatpush1.bf16.msra.mxu0 0
  %136 = vmatprep.subr.bf16.mxu0 0
  %137 = vmatpush1.bf16.msra.mxu0 0
  %138 = vmatprep.subr.bf16.mxu0 0
  %139 = vmatpush1.bf16.msra.mxu0 0
  %140 = vmatprep.subr.bf16.mxu0 0
  %141 = vmatpush1.bf16.msra.mxu0 0
  %142 = vmatprep.subr.bf16.mxu0 0
  %143 = vmatpush1.bf16.msra.mxu0 0
  %144 = vmatprep.subr.bf16.mxu0 0
  %145 = vmatpush1.bf16.msra.mxu0 0
  %146 = vmatprep.subr.bf16.mxu0 0
  %147 = vmatpush1.bf16.msra.mxu0 0
  %148 = vmatprep.subr.bf16.mxu0 0
  %149 = vmatpush1.bf16.msra.mxu0 0
  %150 = vmatprep.subr.bf16.mxu0 0
  %151 = vmatpush1.bf16.msra.mxu0 0
  %152 = vmatprep.mubr.bf16.mxu0 0
  %153 = vmatmul.mubr.bf16.gmra.mrb[0].mxu0 %v118
  %v154 = vpop.f32.mrb[0].mxu0
  %v155 = vadd.f32 %v102, %v154
  %v156 = vpop.f32.mrb[0].mxu0
  %v157 = vpop.f32.mrb[0].mxu0
  %v158 = vadd.f32 %v102, %v157
  %v159 = vpop.f32.mrb[0].mxu0
  %160 = vdwg.mxu0
  %v161 = vmax.f32 %v155, 0.0
  %v162 = vmax.f32 %v158, 0.0
  %v163 = vpack.c.bf16 %v162, %v161
  %v164 = vld [vmem:[%s5] sm:$0xf]
  %v165 = vld [vmem:[%s5 + $0x4] sm:$0xf]
  %v166 = vld [vmem:[%s5 + $0x8] sm:$0xf]
  %v167 = vld [vmem:[%s5 + $0xc] sm:$0xf]
  %v168 = vld [vmem:[%s6] sm:$0x1]
  %v170 = vlaneseq
  %v171 = vshrl.u32 %v170, 7
  %v172 = vsub.s32 0, %v171
  %v173 = vrot.slane %v168, %v172
  %v179 = vunpack.c.l.b16 %v164
  %v180 = vunpack.c.l.b16 %v165
  %v181 = vunpack.c.l.b16 %v166
  %v182 = vunpack.c.l.b16 %v167
  %v183 = vpack.c.b16 %v180, %v179
  %v184 = vpack.c.b16 %v182, %v181
  %v188 = vsel %vm116, %v163, 0
  %190 = vmatprep.subr.bf16.mxu0 0
  %191 = vmatpush1.bf16.msra.mxu0 %v183
  %192 = vmatprep.subr.bf16.mxu0 0
  %193 = vmatpush1.bf16.msra.mxu0 %v184
  %194 = vmatprep.subr.bf16.mxu0 0
  %195 = vmatpush1.bf16.msra.mxu0 0
  %196 = vmatprep.subr.bf16.mxu0 0
  %197 = vmatpush1.bf16.msra.mxu0 0
  %198 = vmatprep.subr.bf16.mxu0 0
  %199 = vmatpush1.bf16.msra.mxu0 0
  %200 = vmatprep.subr.bf16.mxu0 0
  %201 = vmatpush1.bf16.msra.mxu0 0
  %202 = vmatprep.subr.bf16.mxu0 0
  %203 = vmatpush1.bf16.msra.mxu0 0
  %204 = vmatprep.subr.bf16.mxu0 0
  %205 = vmatpush1.bf16.msra.mxu0 0
  %206 = vmatprep.subr.bf16.mxu0 0
  %207 = vmatpush1.bf16.msra.mxu0 0
  %208 = vmatprep.subr.bf16.mxu0 0
  %209 = vmatpush1.bf16.msra.mxu0 0
  %210 = vmatprep.subr.bf16.mxu0 0
  %211 = vmatpush1.bf16.msra.mxu0 0
  %212 = vmatprep.subr.bf16.mxu0 0
  %213 = vmatpush1.bf16.msra.mxu0 0
  %214 = vmatprep.subr.bf16.mxu0 0
  %215 = vmatpush1.bf16.msra.mxu0 0
  %216 = vmatprep.subr.bf16.mxu0 0
  %217 = vmatpush1.bf16.msra.mxu0 0
  %218 = vmatprep.subr.bf16.mxu0 0
  %219 = vmatpush1.bf16.msra.mxu0 0
  %220 = vmatprep.subr.bf16.mxu0 0
  %221 = vmatpush1.bf16.msra.mxu0 0
  %222 = vmatprep.mubr.bf16.mxu0 0
  %223 = vmatmul.mubr.bf16.gmra.mrb[0].mxu0 %v188
  %v224 = vpop.f32.mrb[0].mxu0
  %v225 = vadd.f32 %v173, %v224
  %v226 = vpop.f32.mrb[0].mxu0
  %v227 = vpop.f32.mrb[0].mxu0
  %v228 = vadd.f32 %v173, %v227
  %v229 = vpop.f32.mrb[0].mxu0
  %230 = vdwg.mxu0
  %vm231 = vcmask 31744
  %v232 = vsel %vm231, %v225, -inf
  %233 = vmax.xlane.f32.xlu0 %v232
  %v234 = vpop.xlane.xlu0 %233
  %v235 = vsel %vm231, %v228, -inf
  %236 = vmax.xlane.f32.xlu0 %v235
  %v237 = vpop.xlane.xlu0 %236
  %v238 = vsub.f32 %v225, %v234
  %v239 = vsub.f32 %v228, %v237
  %v240 = vmul.f32 %v238, 1.442695
  %v241 = vpow.pop %v240
  %v242 = vmul.f32 %v239, 1.442695
  %v243 = vpow.pop %v242
  %v244 = vsel %vm231, %v241, 0.0
  %245 = vadd.xlane.f32.xlu0 %v244
  %v246 = vpop.xlane.xlu0 %245
  %v247 = vsel %vm231, %v243, 0.0
  %248 = vadd.xlane.f32.xlu0 %v247
  %v249 = vpop.xlane.xlu0 %248
  %v250 = vlog2.pop %v246
  %v251 = vmul.f32 %v250, 0.6931472
  %v252 = vlog2.pop %v249
  %v253 = vmul.f32 %v252, 0.6931472
  %v254 = vsub.f32 %v238, %v251
  %v255 = vsub.f32 %v239, %v253
  %v256 = vmul.f32 %v254, 1.442695
  %v257 = vpow.pop %v256
  %v258 = vmul.f32 %v255, 1.442695
  %v259 = vpow.pop %v258
  %vm260 = vcmp.eq.f32.partialorder %v257, 0.0
  %vm261 = vcmp.eq.f32.partialorder %v259, 0.0
  %v262 = vsel %vm260, -18.420681, %v254
  %v263 = vsel %vm261, -18.420681, %v255
  %266 = vrot.lane.b32.xlu0 %v262, 4
  %v267 = vpop.permute.xlu0 %266
  %268 = vrot.lane.b32.xlu0 %v263, 4
  %v269 = vpop.permute.xlu0 %268
  %274 = vrot.lane.b32.xlu0 %v161, 8
  %v275 = vpop.permute.xlu0 %274
  %276 = vrot.lane.b32.xlu0 %v162, 8
  %v277 = vpop.permute.xlu0 %276
  %v280 = vsel %vm231, %v257, %v267
  %v281 = vsel %vm231, %v259, %v269
  %vm282 = vcmask 64512
  %v283 = vsel %vm282, %v280, %v275
  %v284 = vsel %vm282, %v281, %v277
  %vm285 = vcmask 326656
  %v286 = vsel %vm285, %v283, 0.0
  %v287 = vsel %vm285, %v284, 0.0
  %289 = vrot.lane.b32.xlu0 %v287, 64
  %v290 = vpop.permute.xlu0 %289
  %vm292 = vcmask 523264
  %v293 = vsel %vm292, %v286, %v290
  %294 = vst [vmem:[%s7] sm:$0xff] %v293
  // Predicated region
  $region30: #{actor_discrete_forward.1} parent=0 // pred_check
    _
  $region31: #{actor_discrete_forward.1} parent=0 // pred_check_branch
    %296 = sbr.rel (0) target = $region33
  $region32: #{actor_discrete_forward.1} parent=0 // pred_region
    _
  $region33: #{actor_discrete_forward.1} parent=0 // pred_fallthru
    _
  // Predicated region
  $region34: #{actor_discrete_forward.1} parent=0 // pred_check
    _
  $region35: #{actor_discrete_forward.1} parent=0 // pred_check_branch
    %298 = sbr.rel (0) target = $region37
  $region36: #{actor_discrete_forward.1} parent=0 // pred_region
    _
  $region37: #{actor_discrete_forward.1} parent=0 // pred_fallthru
    _

</llo_original>
